<compile_context>
chip_gen: v5e
topology: v5e:2x2
jax: 0.10.0
libtpu: 0.0.40
codegen_flags: <defaults>
</compile_context>

<pallas_src>
import jax
import jax.numpy as jnp
from jax.experimental import pallas as pl
from jax.experimental.pallas import tpu as pltpu


# ---------------------------------------------------------------------------
# Fused per-layer kernel (grid over layers; all layers + fc in one pallas_call)
# ---------------------------------------------------------------------------

def _make_rl_kernel(input_dim, hidden_dim, in_seg, has_hidden, compute_dtype):
    """Kernel for one grid step (= one LSTM layer).

    Refs per step l (has_hidden=True):
      x_ref    : (B, D)        resident across steps (constant index map)
      h0_ref   : (B, H)        layer-l block of (L, B, H)
      c0_ref   : (B, H)        layer-l block of (L, B, H)
      w_ref    : (K, 4H)       layer-l merged gate slab [W_ih.T ; W_hh.T], bf16
                               rows [0, d_in) = input part (zero-padded to in_seg),
                               rows [in_seg, in_seg+H) = recurrent part
      b_ref    : (1, 4H)       layer-l bias (b_ih + b_hh), f32
      wfc_ref  : (H, D)        fc weight (resident), bf16
      bfc_ref  : (1, D)        fc bias (resident), f32
    Outputs:
      logits_ref : (B, D)      written only on the last step
      hn_ref     : (B, H)      layer-l block of (L, B, H)
      cn_ref     : (B, H)      layer-l block of (L, B, H)
    Scratch:
      carry_ref  : (B, H) f32  h carried from layer l-1 to layer l
    """
    D, H = input_dim, hidden_dim

    def _pad_lanes(v, width):
        cur = v.shape[1]
        if cur == width:
            return v
        return jnp.concatenate(
            [v, jnp.zeros((v.shape[0], width - cur), v.dtype)], axis=1)

    def kernel(*refs):
        if has_hidden:
            (x_ref, h0_ref, c0_ref, w_ref, b_ref, wfc_ref, bfc_ref,
             logits_ref, hn_ref, cn_ref, carry_ref) = refs
        else:
            (x_ref, w_ref, b_ref, wfc_ref, bfc_ref,
             logits_ref, hn_ref, cn_ref, carry_ref) = refs

        layer = pl.program_id(0)
        is_first = layer == 0

        # Layer input: x for layer 0, previous layer's h (VMEM carry) otherwise.
        # Both are padded (with explicit zero values, never stale VMEM) to the
        # common in_seg width so one select covers both cases.
        x_pad = _pad_lanes(x_ref[...], in_seg)
        h_pad = _pad_lanes(carry_ref[...], in_seg)
        layer_in = jnp.where(is_first, x_pad, h_pad)          # (B, in_seg) f32

        if has_hidden:
            # [layer_in | h_{t-1}] built in registers: useful K = in_seg + H.
            xh = jnp.concatenate([layer_in, h0_ref[...]], axis=1)   # (B, K)
            w = w_ref[...]                                          # (K, 4H)
        else:
            # h_{t-1} == 0: drop the recurrent rows from the contraction.
            xh = layer_in                                           # (B, in_seg)
            w = w_ref[:in_seg, :]                                   # (in_seg, 4H)

        # ONE merged gate matmul (bf16 operands, f32 accumulate).
        gates = (jnp.dot(xh.astype(compute_dtype), w,
                         preferred_element_type=jnp.float32)
                 + b_ref[...])                                      # (B, 4H) f32

        # PyTorch gate order i, f, g, o -> static lane slices of one result.
        i_g = jax.nn.sigmoid(gates[:, 0 * H:1 * H])
        g_g = jnp.tanh(gates[:, 2 * H:3 * H])
        o_g = jax.nn.sigmoid(gates[:, 3 * H:4 * H])

        if has_hidden:
            f_g = jax.nn.sigmoid(gates[:, 1 * H:2 * H])
            c_new = f_g * c0_ref[...] + i_g * g_g
        else:
            # c_prev == 0: forget gate is dead -> skip its sigmoid entirely.
            c_new = i_g * g_g

        h_new = o_g * jnp.tanh(c_new)

        hn_ref[...] = h_new
        cn_ref[...] = c_new
        carry_ref[...] = h_new

        # Fused final Linear, only on the last layer.
        @pl.when(layer == pl.num_programs(0) - 1)
        def _():
            logits_ref[...] = (
                jnp.dot(h_new.astype(compute_dtype), wfc_ref[...],
                        preferred_element_type=jnp.float32)
                + bfc_ref[...])

    return kernel


# ---------------------------------------------------------------------------
# RLController
# ---------------------------------------------------------------------------

class RLController:
    def __init__(self, input_dim, hidden_dim, num_layers, key,
                 param_dtype=jnp.bfloat16):
        self.input_dim = int(input_dim)
        self.hidden_dim = int(hidden_dim)
        self.num_layers = int(num_layers)
        self.param_dtype = param_dtype       # pass jnp.float32 to disable bf16
        D, H, L = self.input_dim, self.hidden_dim, self.num_layers

        # Tight [x | h] packing: input segment = max(D, H), no 128-lane seg pad.
        self.in_seg = max(D, H)
        self.K = self.in_seg + H
        self._fwd_cache = {}

        bound = 1.0 / (H ** 0.5)  # PyTorch LSTM/Linear uniform init bound

        # Raw PyTorch-layout parameters are kept (f32) for the reference check.
        self._raw_lstm = []
        w_slabs, b_rows = [], []
        for layer in range(L):
            d_in = D if layer == 0 else H
            key, k1, k2, k3, k4 = jax.random.split(key, 5)
            w_ih = jax.random.uniform(k1, (4 * H, d_in), minval=-bound,
                                      maxval=bound, dtype=jnp.float32)
            w_hh = jax.random.uniform(k2, (4 * H, H), minval=-bound,
                                      maxval=bound, dtype=jnp.float32)
            b_ih = jax.random.uniform(k3, (4 * H,), minval=-bound,
                                      maxval=bound, dtype=jnp.float32)
            b_hh = jax.random.uniform(k4, (4 * H,), minval=-bound,
                                      maxval=bound, dtype=jnp.float32)
            self._raw_lstm.append((w_ih, w_hh, b_ih, b_hh))

            # Merged (K, 4H) slab: columns are [i | f | g | o] (PyTorch order),
            # rows [0, d_in) = W_ih.T, rows [in_seg, in_seg+H) = W_hh.T.
            slab = jnp.zeros((self.K, 4 * H), jnp.float32)
            slab = slab.at[:d_in, :].set(w_ih.T)
            slab = slab.at[self.in_seg:self.in_seg + H, :].set(w_hh.T)
            w_slabs.append(slab)
            b_rows.append((b_ih + b_hh)[None, :])

        # (L, K, 4H) bf16 weight stack (per-layer blocks, double-buffered by
        # Pallas across the layer grid) and (L, 1, 4H) f32 biases.
        self.w_gate = jnp.stack(w_slabs, axis=0).astype(param_dtype)
        self.b_gate = jnp.stack(b_rows, axis=0)

        key, k5, k6 = jax.random.split(key, 3)
        w_fc = jax.random.uniform(k5, (D, H), minval=-bound, maxval=bound,
                                  dtype=jnp.float32)
        b_fc = jax.random.uniform(k6, (D,), minval=-bound, maxval=bound,
                                  dtype=jnp.float32)
        self._raw_fc = (w_fc, b_fc)
        self.w_fc_t = w_fc.T.astype(param_dtype)   # (H, D) bf16
        self.b_fc = b_fc[None, :]                  # (1, D) f32

    # -- scoped-VMEM budget (scales with H/L instead of relying on defaults) --
    def _vmem_limit_bytes(self, batch):
        D, H, K = self.input_dim, self.hidden_dim, self.K
        wbytes = jnp.dtype(self.param_dtype).itemsize
        per_layer = (2 * (K * 4 * H * wbytes + 4 * H * 4)      # w + b, x2 buffers
                     + 2 * 2 * batch * H * 4                   # h0/c0 blocks
                     + 2 * 2 * batch * H * 4)                  # hn/cn blocks
        resident = (batch * D * 4 + H * D * wbytes + D * 4
                    + batch * D * 4 + batch * H * 4)           # x, fc, logits, carry
        est = 2 * (per_layer + resident) + (1 << 20)
        return int(min(max(est, 4 << 20), 64 << 20))

    # -- fused pallas_call builder (cached per batch size / hidden presence) --
    def _get_forward_fn(self, batch, has_hidden):
        cache_key = (batch, has_hidden)
        fn = self._fwd_cache.get(cache_key)
        if fn is not None:
            return fn

        D, H, L, K = self.input_dim, self.hidden_dim, self.num_layers, self.K
        kernel = _make_rl_kernel(D, H, self.in_seg, has_hidden, self.param_dtype)

        def layer_block(shape):     # per-layer block, leading layer dim squeezed
            return pl.BlockSpec(shape, lambda l: (l, 0, 0))

        def resident(shape):        # full array, constant index -> fetched once
            return pl.BlockSpec(shape, lambda l: (0, 0))

        in_specs = [resident((batch, D))]                       # x
        if has_hidden:
            in_specs += [layer_block((None, batch, H)),         # h0
                         layer_block((None, batch, H))]         # c0
        in_specs += [layer_block((None, K, 4 * H)),             # w_gate slab
                     layer_block((None, 1, 4 * H)),             # b_gate
                     resident((H, D)),                          # w_fc_t
                     resident((1, D))]                          # b_fc

        out_specs = (resident((batch, D)),                      # logits
                     layer_block((None, batch, H)),             # h_n
                     layer_block((None, batch, H)))             # c_n

        grid_spec = pltpu.PrefetchScalarGridSpec(
            num_scalar_prefetch=0,
            grid=(L,),
            in_specs=in_specs,
            out_specs=out_specs,
            scratch_shapes=[pltpu.VMEM((batch, H), jnp.float32)],  # h carry
        )

        fn = pl.pallas_call(
            kernel,
            out_shape=(
                jax.ShapeDtypeStruct((batch, D), jnp.float32),      # logits
                jax.ShapeDtypeStruct((L, batch, H), jnp.float32),   # h_n
                jax.ShapeDtypeStruct((L, batch, H), jnp.float32),   # c_n
            ),
            grid_spec=grid_spec,
            compiler_params=pltpu.CompilerParams(
                dimension_semantics=("arbitrary",),   # sequential layer carry
                vmem_limit_bytes=self._vmem_limit_bytes(batch)),
        )
        fn = jax.jit(fn)   # cache the executable, cut per-call dispatch
        self._fwd_cache[cache_key] = fn
        return fn

    def forward(self, x, hidden=None):
        """x: (batch, input_dim). hidden: optional (h0, c0), each
        (num_layers, batch, hidden_dim). Returns (logits, (h_n, c_n)) —
        same semantics as the PyTorch module with seq_len == 1."""
        B = x.shape[0]
        fn = self._get_forward_fn(B, hidden is not None)
        if hidden is not None:
            h0, c0 = hidden
            logits, h_n, c_n = fn(x, h0, c0, self.w_gate, self.b_gate,
                                  self.w_fc_t, self.b_fc)
        else:
            logits, h_n, c_n = fn(x, self.w_gate, self.b_gate,
                                  self.w_fc_t, self.b_fc)
        return logits, (h_n, c_n)

    def sample(self, key):
        # Equivalent of: start = zeros(input_dim); Categorical(logits).sample()
        # TODO(synk): Categorical sampling stays host-side glue
        # (jax.random.categorical); no Pallas equivalent is warranted.
        start = jnp.zeros((1, self.input_dim), jnp.float32)
        logits, hidden = self.forward(start)
        action = jax.random.categorical(key, logits[0])
        return action, hidden


# ---------------------------------------------------------------------------
# Pure-JAX reference (PyTorch-layout weights) for correctness checking.
# Weights are quantised to param_dtype (matching what the kernel stores), so
# the residual difference is only the kernel's bf16 activation casts and
# accumulation order.
# ---------------------------------------------------------------------------

def _ref_forward(ctrl, x, hidden=None):
    qd = ctrl.param_dtype
    q = lambda w: w.astype(qd).astype(jnp.float32)
    B = x.shape[0]
    H = ctrl.hidden_dim
    L = ctrl.num_layers
    if hidden is None:
        h0 = jnp.zeros((L, B, H), jnp.float32)
        c0 = jnp.zeros((L, B, H), jnp.float32)
    else:
        h0, c0 = hidden
    layer_in = x
    h_out, c_out = [], []
    for l in range(L):
        w_ih, w_hh, b_ih, b_hh = ctrl._raw_lstm[l]
        gates = layer_in @ q(w_ih).T + h0[l] @ q(w_hh).T + b_ih + b_hh
        i = jax.nn.sigmoid(gates[:, 0 * H:1 * H])
        f = jax.nn.sigmoid(gates[:, 1 * H:2 * H])
        g = jnp.tanh(gates[:, 2 * H:3 * H])
        o = jax.nn.sigmoid(gates[:, 3 * H:4 * H])
        c_new = f * c0[l] + i * g
        h_new = o * jnp.tanh(c_new)
        h_out.append(h_new)
        c_out.append(c_new)
        layer_in = h_new
    w_fc, b_fc = ctrl._raw_fc
    logits = layer_in @ q(w_fc).T + b_fc
    return logits, (jnp.stack(h_out, axis=0), jnp.stack(c_out, axis=0))


# ---------------------------------------------------------------------------

if __name__ == "__main__":
    key = jax.random.PRNGKey(0)
    key, pkey, xkey, hkey, ckey, skey = jax.random.split(key, 6)

    input_dim, hidden_dim, num_layers = 8, 32, 2
    batch = 2

    ctrl = RLController(input_dim, hidden_dim, num_layers, pkey)
    x = jax.random.normal(xkey, (batch, input_dim), dtype=jnp.float32)

    # bf16 weights + bf16 dot operands -> loosened tolerance (review item).
    tol = dict(atol=2e-2, rtol=2e-2)

    # 1) hidden=None (zero state handled inside the kernel; forget gate skipped)
    logits0, (h_n0, c_n0) = ctrl.forward(x)
    jax.block_until_ready((logits0, h_n0, c_n0))
    ref_l0, (ref_h0, ref_c0) = _ref_forward(ctrl, x, None)

    assert logits0.shape == (batch, input_dim)
    assert h_n0.shape == (num_layers, batch, hidden_dim)
    assert c_n0.shape == (num_layers, batch, hidden_dim)
    assert jnp.allclose(logits0, ref_l0, **tol)
    assert jnp.allclose(h_n0, ref_h0, **tol)
    assert jnp.allclose(c_n0, ref_c0, **tol)

    # 2) explicit hidden state
    h0 = jax.random.normal(hkey, (num_layers, batch, hidden_dim),
                           dtype=jnp.float32)
    c0 = jax.random.normal(ckey, (num_layers, batch, hidden_dim),
                           dtype=jnp.float32)
    logits1, (h_n1, c_n1) = ctrl.forward(x, (h0, c0))
    jax.block_until_ready((logits1, h_n1, c_n1))
    ref_l1, (ref_h1, ref_c1) = _ref_forward(ctrl, x, (h0, c0))
    assert jnp.allclose(logits1, ref_l1, **tol)
    assert jnp.allclose(h_n1, ref_h1, **tol)
    assert jnp.allclose(c_n1, ref_c1, **tol)

    # 3) sample() path (B = 1)
    action, _ = ctrl.sample(skey)
    jax.block_until_ready(action)
    assert 0 <= int(action) < input_dim

    print("KERNEL_OK")
</pallas_src>

<mosaic_0001>
module attributes {stable_mosaic.version = 11 : i64} {
  func.func @kernel(%arg0: i32, %arg1: memref<2x8xf32, #tpu.memory_space<vmem>>, %arg2: memref<1x64x128xbf16, #tpu.memory_space<vmem>>, %arg3: memref<1x1x128xf32, #tpu.memory_space<vmem>>, %arg4: memref<32x8xbf16, #tpu.memory_space<vmem>>, %arg5: memref<1x8xf32, #tpu.memory_space<vmem>>, %arg6: memref<2x8xf32, #tpu.memory_space<vmem>>, %arg7: memref<1x2x32xf32, #tpu.memory_space<vmem>>, %arg8: memref<1x2x32xf32, #tpu.memory_space<vmem>>, %arg9: memref<2x32xf32, #tpu.memory_space<vmem>>) attributes {dimension_semantics = [#tpu.dimension_semantics<arbitrary>], iteration_bounds = array<i64: 2>, scalar_prefetch = 0 : i64, scratch_operands = 1 : i64, tpu.core_type = #tpu.core_type<tc>, window_params = [{pipeline_mode = #tpu.pipeline_mode<synchronous>, transform_indices = @transform_0, window_bounds = array<i64: 2, 8>}, {transform_indices = @transform_1, window_bounds = array<i64: 1, 64, 128>}, {transform_indices = @transform_2, window_bounds = array<i64: 1, 1, 128>}, {pipeline_mode = #tpu.pipeline_mode<synchronous>, transform_indices = @transform_3, window_bounds = array<i64: 32, 8>}, {pipeline_mode = #tpu.pipeline_mode<synchronous>, transform_indices = @transform_4, window_bounds = array<i64: 1, 8>}, {pipeline_mode = #tpu.pipeline_mode<synchronous>, transform_indices = @transform_5, window_bounds = array<i64: 2, 8>}, {transform_indices = @transform_6, window_bounds = array<i64: 1, 2, 32>}, {transform_indices = @transform_7, window_bounds = array<i64: 1, 2, 32>}]} {
    %c0_i32 = arith.constant 0 : i32
    %0 = arith.cmpi eq, %arg0, %c0_i32 : i32
    %c0 = arith.constant 0 : index
    %c0_0 = arith.constant 0 : index
    %1 = vector.load %arg1[%c0, %c0_0] : memref<2x8xf32, #tpu.memory_space<vmem>>, vector<2x8xf32>
    %cst = arith.constant 0.000000e+00 : f32
    %2 = vector.broadcast %cst : f32 to vector<2x24xf32>
    %3 = tpu.concatenate %1, %2 in 1 : vector<2x8xf32>, vector<2x24xf32> -> vector<2x32xf32>
    %c0_1 = arith.constant 0 : index
    %c0_2 = arith.constant 0 : index
    %4 = vector.load %arg9[%c0_1, %c0_2] : memref<2x32xf32, #tpu.memory_space<vmem>>, vector<2x32xf32>
    %5 = arith.select %0, %3, %4 : vector<2x32xf32>
    %c0_3 = arith.constant 0 : index
    %c0_4 = arith.constant 0 : index
    %c0_5 = arith.constant 0 : index
    %6 = vector.load %arg2[%c0_3, %c0_4, %c0_5] : memref<1x64x128xbf16, #tpu.memory_space<vmem>>, vector<1x32x128xbf16>
    %7 = vector.shape_cast %6 : vector<1x32x128xbf16> to vector<32x128xbf16>
    %8 = arith.truncf %5 : vector<2x32xf32> to vector<2x32xbf16>
    %cst_6 = arith.constant dense<0.000000e+00> : vector<2x128xf32>
    %9 = tpu.matmul %8, %7, %cst_6 {dimension_numbers = #tpu.dot_dimension_numbers<[1], [0], [0], [1], [0, 0, 1, 1], [], []>} : vector<2x32xbf16>, vector<32x128xbf16>, vector<2x128xf32> -> vector<2x128xf32>
    %c0_7 = arith.constant 0 : index
    %c0_8 = arith.constant 0 : index
    %c0_9 = arith.constant 0 : index
    %10 = vector.load %arg3[%c0_7, %c0_8, %c0_9] : memref<1x1x128xf32, #tpu.memory_space<vmem>>, vector<1x1x128xf32>
    %11 = vector.shape_cast %10 : vector<1x1x128xf32> to vector<1x128xf32>
    %12 = vector.broadcast %11 : vector<1x128xf32> to vector<2x128xf32>
    %13 = arith.addf %9, %12 : vector<2x128xf32>
    %14 = vector.extract_strided_slice %13 {offsets = [0, 0], sizes = [2, 32], strides = [1, 1]} : vector<2x128xf32> to vector<2x32xf32>
    %15 = arith.negf %14 : vector<2x32xf32>
    %16 = math.exp %15 : vector<2x32xf32>
    %cst_10 = arith.constant 1.000000e+00 : f32
    %17 = vector.broadcast %cst_10 : f32 to vector<2x32xf32>
    %18 = arith.addf %17, %16 : vector<2x32xf32>
    %19 = arith.divf %17, %18 : vector<2x32xf32>
    %20 = vector.extract_strided_slice %13 {offsets = [0, 64], sizes = [2, 32], strides = [1, 1]} : vector<2x128xf32> to vector<2x32xf32>
    %21 = math.tanh %20 : vector<2x32xf32>
    %22 = vector.extract_strided_slice %13 {offsets = [0, 96], sizes = [2, 32], strides = [1, 1]} : vector<2x128xf32> to vector<2x32xf32>
    %23 = arith.negf %22 : vector<2x32xf32>
    %24 = math.exp %23 : vector<2x32xf32>
    %cst_11 = arith.constant 1.000000e+00 : f32
    %25 = vector.broadcast %cst_11 : f32 to vector<2x32xf32>
    %26 = arith.addf %25, %24 : vector<2x32xf32>
    %27 = arith.divf %25, %26 : vector<2x32xf32>
    %28 = arith.mulf %19, %21 : vector<2x32xf32>
    %29 = math.tanh %28 : vector<2x32xf32>
    %30 = arith.mulf %27, %29 : vector<2x32xf32>
    %c0_12 = arith.constant 0 : index
    %c0_13 = arith.constant 0 : index
    %c0_14 = arith.constant 0 : index
    %31 = vector.load %arg7[%c0_12, %c0_13, %c0_14] : memref<1x2x32xf32, #tpu.memory_space<vmem>>, vector<1x2x32xf32>
    %32 = vector.shape_cast %31 : vector<1x2x32xf32> to vector<2x32xf32>
    %33 = vector.shape_cast %30 : vector<2x32xf32> to vector<1x2x32xf32>
    tpu.vector_store %arg7[%c0_12, %c0_13, %c0_14], %33 {strides = array<i32>} : memref<1x2x32xf32, #tpu.memory_space<vmem>>, vector<1x2x32xf32>,
    %c0_15 = arith.constant 0 : index
    %c0_16 = arith.constant 0 : index
    %c0_17 = arith.constant 0 : index
    %34 = vector.load %arg8[%c0_15, %c0_16, %c0_17] : memref<1x2x32xf32, #tpu.memory_space<vmem>>, vector<1x2x32xf32>
    %35 = vector.shape_cast %34 : vector<1x2x32xf32> to vector<2x32xf32>
    %36 = vector.shape_cast %28 : vector<2x32xf32> to vector<1x2x32xf32>
    tpu.vector_store %arg8[%c0_15, %c0_16, %c0_17], %36 {strides = array<i32>} : memref<1x2x32xf32, #tpu.memory_space<vmem>>, vector<1x2x32xf32>,
    %c0_18 = arith.constant 0 : index
    %c0_19 = arith.constant 0 : index
    %37 = vector.load %arg9[%c0_18, %c0_19] : memref<2x32xf32, #tpu.memory_space<vmem>>, vector<2x32xf32>
    tpu.vector_store %arg9[%c0_18, %c0_19], %30 {strides = array<i32>} : memref<2x32xf32, #tpu.memory_space<vmem>>, vector<2x32xf32>,
    %c1_i32 = arith.constant 1 : i32
    %38 = arith.cmpi eq, %arg0, %c1_i32 : i32
    %39 = arith.extui %38 : i1 to i32
    %c0_i32_20 = arith.constant 0 : i32
    %40 = arith.cmpi ne, %39, %c0_i32_20 : i32
    scf.if %40 {
      %41 = arith.truncf %30 : vector<2x32xf32> to vector<2x32xbf16>
      %c0_21 = arith.constant 0 : index
      %c0_22 = arith.constant 0 : index
      %42 = vector.load %arg4[%c0_21, %c0_22] : memref<32x8xbf16, #tpu.memory_space<vmem>>, vector<32x8xbf16>
      %cst_23 = arith.constant dense<0.000000e+00> : vector<2x8xf32>
      %43 = tpu.matmul %41, %42, %cst_23 {dimension_numbers = #tpu.dot_dimension_numbers<[1], [0], [0], [1], [0, 0, 1, 1], [], []>} : vector<2x32xbf16>, vector<32x8xbf16>, vector<2x8xf32> -> vector<2x8xf32>
      %c0_24 = arith.constant 0 : index
      %c0_25 = arith.constant 0 : index
      %44 = vector.load %arg5[%c0_24, %c0_25] : memref<1x8xf32, #tpu.memory_space<vmem>>, vector<1x8xf32>
      %45 = vector.broadcast %44 : vector<1x8xf32> to vector<2x8xf32>
      %46 = arith.addf %43, %45 : vector<2x8xf32>
      %c0_26 = arith.constant 0 : index
      %c0_27 = arith.constant 0 : index
      %47 = vector.load %arg6[%c0_26, %c0_27] : memref<2x8xf32, #tpu.memory_space<vmem>>, vector<2x8xf32>
      tpu.vector_store %arg6[%c0_26, %c0_27], %46 {strides = array<i32>} : memref<2x8xf32, #tpu.memory_space<vmem>>, vector<2x8xf32>,
    } else {
    }
    return
  }
  func.func @transform_0(%arg0: i32) -> (i32, i32) {
    %c0_i32 = arith.constant 0 : i32
    %c0_i32_0 = arith.constant 0 : i32
    %c0_i32_1 = arith.constant 0 : i32
    return %c0_i32, %c0_i32_0 : i32, i32
  }
  func.func @transform_1(%arg0: i32) -> (i32, i32, i32) {
    %c0_i32 = arith.constant 0 : i32
    %c0_i32_0 = arith.constant 0 : i32
    %c0_i32_1 = arith.constant 0 : i32
    return %arg0, %c0_i32, %c0_i32_0 : i32, i32, i32
  }
  func.func @transform_2(%arg0: i32) -> (i32, i32, i32) {
    %c0_i32 = arith.constant 0 : i32
    %c0_i32_0 = arith.constant 0 : i32
    %c0_i32_1 = arith.constant 0 : i32
    return %arg0, %c0_i32, %c0_i32_0 : i32, i32, i32
  }
  func.func @transform_3(%arg0: i32) -> (i32, i32) {
    %c0_i32 = arith.constant 0 : i32
    %c0_i32_0 = arith.constant 0 : i32
    %c0_i32_1 = arith.constant 0 : i32
    return %c0_i32, %c0_i32_0 : i32, i32
  }
  func.func @transform_4(%arg0: i32) -> (i32, i32) {
    %c0_i32 = arith.constant 0 : i32
    %c0_i32_0 = arith.constant 0 : i32
    %c0_i32_1 = arith.constant 0 : i32
    return %c0_i32, %c0_i32_0 : i32, i32
  }
  func.func @transform_5(%arg0: i32) -> (i32, i32) {
    %c0_i32 = arith.constant 0 : i32
    %c0_i32_0 = arith.constant 0 : i32
    %c0_i32_1 = arith.constant 0 : i32
    return %c0_i32, %c0_i32_0 : i32, i32
  }
  func.func @transform_6(%arg0: i32) -> (i32, i32, i32) {
    %c0_i32 = arith.constant 0 : i32
    %c0_i32_0 = arith.constant 0 : i32
    %c0_i32_1 = arith.constant 0 : i32
    return %arg0, %c0_i32, %c0_i32_0 : i32, i32, i32
  }
  func.func @transform_7(%arg0: i32) -> (i32, i32, i32) {
    %c0_i32 = arith.constant 0 : i32
    %c0_i32_0 = arith.constant 0 : i32
    %c0_i32_1 = arith.constant 0 : i32
    return %arg0, %c0_i32, %c0_i32_0 : i32, i32, i32
  }
}

</mosaic_0001>

<llo_original>
// kernel: tpu_custom_call.1
$region0: #{tpu_custom_call.1}
  #allocation0 [shape = 'u32[]', space=smem, size = 0x4, offset = 0x4, fixed_abs, tag = 'smem constant byte address 0x4 - core index']
  #allocation1 [shape = 'u32[72,128]{1,0:T(1,128)}', space=vmem, size = 0x9000, scoped, tag = 'internal scratch']
  #allocation2 [shape = 'f32[2,32]{1,0:T(2,128)}', space=vmem, size = 0x400, scoped, tag = 'scratch operand']
  %s0 = inlined_call_operand.vmem [shape: f32[2,8], index: 0, kind: input, shape index: {}]
  %s1 = inlined_call_operand.hbm [shape: bf16[2,64,128], index: 1, kind: input, shape index: {}]
  %s2 = inlined_call_operand.vmem [shape: f32[2,1,128], index: 2, kind: input, shape index: {}]
  %s3 = inlined_call_operand.vmem [shape: bf16[32,8], index: 3, kind: input, shape index: {}]
  %s4 = inlined_call_operand.vmem [shape: f32[1,8], index: 4, kind: input, shape index: {}]
  %s5 = inlined_call_operand.hbm [shape: f32[2,8], index: 5, kind: output, shape index: {0}]
  %s6 = inlined_call_operand.hbm [shape: f32[2,2,32], index: 6, kind: output, shape index: {1}]
  %s7 = inlined_call_operand.hbm [shape: f32[2,2,32], index: 7, kind: output, shape index: {2}]
  %8 = xla_tuple %s5, %s6, %s7
  %s9 = sld [smem:[#allocation0]]
  $region77: #{tpu_custom_call.1} parent=0
    _
  %s11 = ssub.s32 1, %s9
  %s12 = scalar_select 0, %s11, %s9
  $region1: #{tpu_custom_call.1} parent=0
    #allocation3 [shape = 'u8[32768]{0}', space=vmem, size = 0x8000, scoped, tag = 'input window, operand 1']
    #allocation4 [shape = 's32[2]{0}', space=sflag, size = 0x8, scoped, tag = 'scoped memory for tpu_custom_call.1']
    #allocation5 [shape = 's32[2]{0}', space=sflag, size = 0x8, scoped, tag = 'scoped memory for tpu_custom_call.1']
    #allocation6 [shape = 'u8[1024]{0}', space=vmem, size = 0x400, scoped, tag = 'output window, operand 0, single buffered']
    #allocation7 [shape = 'u8[2048]{0}', space=vmem, size = 0x800, scoped, tag = 'output window, operand 1']
    #allocation8 [shape = 's32[2]{0}', space=sflag, size = 0x8, scoped, tag = 'scoped memory for tpu_custom_call.1']
    #allocation9 [shape = 'u8[2048]{0}', space=vmem, size = 0x800, scoped, tag = 'output window, operand 2']
    %13 = vsyncpa [#allocation4], 0
    %s14 = scalar_lea.sflag [#allocation4], 1
    %15 = vsyncpa %s14, 0
    %16 = vsyncpa [#allocation5], 0
    %17 = vsyncpa [#allocation8], 0
    %s18 = scalar_lea.sflag [#allocation8], 1
    %19 = vsyncpa %s18, 0
    loop: start=0, step=1, limit=4
    $region2: #{tpu_custom_call.1} parent=1 // loop_pre_header
      _
    $region3: #{tpu_custom_call.1} parent=1 // loop_header
      %s21 = sphi 0, %s25
      %p22 = scmp.ge.s32.totalorder %s21, 4
      %s29 = sphi 0, %s29
      %s31 = sphi 0, %s29
      %s32 = sphi 0, %s31
      %s46 = sphi 0, %s32
      %s52 = sphi 0, %s54
      %s55 = sphi 0, %s52
      %s56 = sphi 0, %s55
      %s72 = sphi 0, %s56
      %s78 = sphi 0, %s80
      %s81 = sphi 0, %s78
      %s82 = sphi 0, %s81
      %s98 = sphi 0, %s82
      %s102 = sphi 0, %s102
      %s104 = sphi 0, %s102
      %s105 = sphi 0, %s104
      %s119 = sphi 0, %s105
      %s123 = sphi 0, %s123
      %s125 = sphi 0, %s123
      %s126 = sphi 0, %s125
      %s140 = sphi 0, %s126
      %s144 = sphi 0, %s144
      %s146 = sphi 0, %s144
      %s147 = sphi 0, %s146
      %s161 = sphi 0, %s147
      %s167 = sphi 0, %s169
      %s170 = sphi 0, %s167
      %s171 = sphi 0, %s170
      %s187 = sphi 0, %s171
      %s193 = sphi 0, %s195
      %s196 = sphi 0, %s193
      %s197 = sphi 0, %s196
      %s213 = sphi 0, %s197
    $region4: #{tpu_custom_call.1} parent=1 // loop_header_branch
      %24 = sbr.rel (%p22) target = $region8
    $region5: #{tpu_custom_call.1} parent=1 // loop_body
      %s26 = ssub.s32 %s21, 1
      %s27 = ssub.s32 %s21, 2
      %s28 = sadd.s32 %s21, 1
      %s30 = sadd.s32 %s29, 1
      %p33 = scmp.eq.s32.totalorder %s21, 1
      %p34 = scmp.ne.s32.totalorder %s29, %s31
      %p35 = scmp.eq.s32.totalorder %s21, 0
      %p36 = por %p34, %p35
      %p37 = scmp.ne.s32.totalorder %s29, %s31
      %p38 = scmp.eq.s32.totalorder %s26, 1
      %p39 = por %p37, %p38
      %p40 = scmp.ne.s32.totalorder %s31, %s32
      %p41 = scmp.eq.s32.totalorder %s26, 0
      %p42 = por %p40, %p41
      %p43 = scmp.ne.s32.totalorder %s31, %s32
      %p44 = scmp.eq.s32.totalorder %s27, 1
      %p45 = por %p43, %p44
      %p47 = scmp.ne.s32.totalorder %s32, %s46
      %p48 = scmp.eq.s32.totalorder %s27, 0
      %p49 = por %p47, %p48
      %s50 = ssub.s32 %s21, %s28
      %p51 = scmp.eq.s32.totalorder %s50, 0
      %s53 = sadd.s32 %s52, 1
      %s54 = scalar_select %p51, %s52, %s53
      %p57 = pneg %p51
      %p58 = scmp.eq.s32.totalorder %s21, 1
      %p59 = por %p57, %p58
      %p60 = scmp.ne.s32.totalorder %s52, %s55
      %p61 = scmp.eq.s32.totalorder %s21, 0
      %p62 = por %p60, %p61
      %p63 = scmp.ne.s32.totalorder %s52, %s55
      %p64 = scmp.eq.s32.totalorder %s26, 1
      %p65 = por %p63, %p64
      %p66 = scmp.ne.s32.totalorder %s55, %s56
      %p67 = scmp.eq.s32.totalorder %s26, 0
      %p68 = por %p66, %p67
      %p69 = scmp.ne.s32.totalorder %s55, %s56
      %p70 = scmp.eq.s32.totalorder %s27, 1
      %p71 = por %p69, %p70
      %p73 = scmp.ne.s32.totalorder %s56, %s72
      %p74 = scmp.eq.s32.totalorder %s27, 0
      %p75 = por %p73, %p74
      %s76 = ssub.s32 %s21, %s28
      %p77 = scmp.eq.s32.totalorder %s76, 0
      %s79 = sadd.s32 %s78, 1
      %s80 = scalar_select %p77, %s78, %s79
      %p83 = pneg %p77
      %p84 = scmp.eq.s32.totalorder %s21, 1
      %p85 = por %p83, %p84
      %p86 = scmp.ne.s32.totalorder %s78, %s81
      %p87 = scmp.eq.s32.totalorder %s21, 0
      %p88 = por %p86, %p87
      %p89 = scmp.ne.s32.totalorder %s78, %s81
      %p90 = scmp.eq.s32.totalorder %s26, 1
      %p91 = por %p89, %p90
      %p92 = scmp.ne.s32.totalorder %s81, %s82
      %p93 = scmp.eq.s32.totalorder %s26, 0
      %p94 = por %p92, %p93
      %p95 = scmp.ne.s32.totalorder %s81, %s82
      %p96 = scmp.eq.s32.totalorder %s27, 1
      %p97 = por %p95, %p96
      %p99 = scmp.ne.s32.totalorder %s82, %s98
      %p100 = scmp.eq.s32.totalorder %s27, 0
      %p101 = por %p99, %p100
      %s103 = sadd.s32 %s102, 1
      %p106 = scmp.eq.s32.totalorder %s21, 1
      %p107 = scmp.ne.s32.totalorder %s102, %s104
      %p108 = scmp.eq.s32.totalorder %s21, 0
      %p109 = por %p107, %p108
      %p110 = scmp.ne.s32.totalorder %s102, %s104
      %p111 = scmp.eq.s32.totalorder %s26, 1
      %p112 = por %p110, %p111
      %p113 = scmp.ne.s32.totalorder %s104, %s105
      %p114 = scmp.eq.s32.totalorder %s26, 0
      %p115 = por %p113, %p114
      %p116 = scmp.ne.s32.totalorder %s104, %s105
      %p117 = scmp.eq.s32.totalorder %s27, 1
      %p118 = por %p116, %p117
      %p120 = scmp.ne.s32.totalorder %s105, %s119
      %p121 = scmp.eq.s32.totalorder %s27, 0
      %p122 = por %p120, %p121
      %s124 = sadd.s32 %s123, 1
      %p127 = scmp.eq.s32.totalorder %s21, 1
      %p128 = scmp.ne.s32.totalorder %s123, %s125
      %p129 = scmp.eq.s32.totalorder %s21, 0
      %p130 = por %p128, %p129
      %p131 = scmp.ne.s32.totalorder %s123, %s125
      %p132 = scmp.eq.s32.totalorder %s26, 1
      %p133 = por %p131, %p132
      %p134 = scmp.ne.s32.totalorder %s125, %s126
      %p135 = scmp.eq.s32.totalorder %s26, 0
      %p136 = por %p134, %p135
      %p137 = scmp.ne.s32.totalorder %s125, %s126
      %p138 = scmp.eq.s32.totalorder %s27, 1
      %p139 = por %p137, %p138
      %p141 = scmp.ne.s32.totalorder %s126, %s140
      %p142 = scmp.eq.s32.totalorder %s27, 0
      %p143 = por %p141, %p142
      %s145 = sadd.s32 %s144, 1
      %p148 = scmp.eq.s32.totalorder %s21, 1
      %p149 = scmp.ne.s32.totalorder %s144, %s146
      %p150 = scmp.eq.s32.totalorder %s21, 0
      %p151 = por %p149, %p150
      %p152 = scmp.ne.s32.totalorder %s144, %s146
      %p153 = scmp.eq.s32.totalorder %s26, 1
      %p154 = por %p152, %p153
      %p155 = scmp.ne.s32.totalorder %s146, %s147
      %p156 = scmp.eq.s32.totalorder %s26, 0
      %p157 = por %p155, %p156
      %p158 = scmp.ne.s32.totalorder %s146, %s147
      %p159 = scmp.eq.s32.totalorder %s27, 1
      %p160 = por %p158, %p159
      %p162 = scmp.ne.s32.totalorder %s147, %s161
      %p163 = scmp.eq.s32.totalorder %s27, 0
      %p164 = por %p162, %p163
      %s165 = ssub.s32 %s21, %s28
      %p166 = scmp.eq.s32.totalorder %s165, 0
      %s168 = sadd.s32 %s167, 1
      %s169 = scalar_select %p166, %s167, %s168
      %p172 = pneg %p166
      %p173 = scmp.eq.s32.totalorder %s21, 1
      %p174 = por %p172, %p173
      %p175 = scmp.ne.s32.totalorder %s167, %s170
      %p176 = scmp.eq.s32.totalorder %s21, 0
      %p177 = por %p175, %p176
      %p178 = scmp.ne.s32.totalorder %s167, %s170
      %p179 = scmp.eq.s32.totalorder %s26, 1
      %p180 = por %p178, %p179
      %p181 = scmp.ne.s32.totalorder %s170, %s171
      %p182 = scmp.eq.s32.totalorder %s26, 0
      %p183 = por %p181, %p182
      %p184 = scmp.ne.s32.totalorder %s170, %s171
      %p185 = scmp.eq.s32.totalorder %s27, 1
      %p186 = por %p184, %p185
      %p188 = scmp.ne.s32.totalorder %s171, %s187
      %p189 = scmp.eq.s32.totalorder %s27, 0
      %p190 = por %p188, %p189
      %s191 = ssub.s32 %s21, %s28
      %p192 = scmp.eq.s32.totalorder %s191, 0
      %s194 = sadd.s32 %s193, 1
      %s195 = scalar_select %p192, %s193, %s194
      %p198 = pneg %p192
      %p199 = scmp.eq.s32.totalorder %s21, 1
      %p200 = por %p198, %p199
      %p201 = scmp.ne.s32.totalorder %s193, %s196
      %p202 = scmp.eq.s32.totalorder %s21, 0
      %p203 = por %p201, %p202
      %p204 = scmp.ne.s32.totalorder %s193, %s196
      %p205 = scmp.eq.s32.totalorder %s26, 1
      %p206 = por %p204, %p205
      %p207 = scmp.ne.s32.totalorder %s196, %s197
      %p208 = scmp.eq.s32.totalorder %s26, 0
      %p209 = por %p207, %p208
      %p210 = scmp.ne.s32.totalorder %s196, %s197
      %p211 = scmp.eq.s32.totalorder %s27, 1
      %p212 = por %p210, %p211
      %p214 = scmp.ne.s32.totalorder %s197, %s213
      %p215 = scmp.eq.s32.totalorder %s27, 0
      %p216 = por %p214, %p215
      %p217 = scmp.le.s32.totalorder 1, %s21
      %p218 = scmp.lt.s32.totalorder %s21, 3
      %p219 = pnand %p217, %p218
      %p220 = pneg %p219
      // Predicated region
      $region9: #{tpu_custom_call.1} parent=5 // pred_check
        _
      $region10: #{tpu_custom_call.1} parent=5 // pred_check_branch
        %222 = sbr.rel (%p219) target = $region12
      $region11: #{tpu_custom_call.1} parent=5 // pred_region
        %s223 = ssub.s32 %s21, 1
        // Predicated region
        $region13: #{tpu_custom_call.1} parent=11 // pred_check
          %p224 = pneg %p42
        $region14: #{tpu_custom_call.1} parent=11 // pred_check_branch
          %226 = sbr.rel (%p224) target = $region16
        $region15: #{tpu_custom_call.1} parent=11 // pred_region
          _
        $region16: #{tpu_custom_call.1} parent=11 // pred_fallthru
          _
        // Predicated region
        $region17: #{tpu_custom_call.1} parent=11 // pred_check
          %p227 = pneg %p115
        $region18: #{tpu_custom_call.1} parent=11 // pred_check_branch
          %229 = sbr.rel (%p227) target = $region20
        $region19: #{tpu_custom_call.1} parent=11 // pred_region
          _
        $region20: #{tpu_custom_call.1} parent=11 // pred_fallthru
          _
        // Predicated region
        $region21: #{tpu_custom_call.1} parent=11 // pred_check
          %p230 = pneg %p136
        $region22: #{tpu_custom_call.1} parent=11 // pred_check_branch
          %232 = sbr.rel (%p230) target = $region24
        $region23: #{tpu_custom_call.1} parent=11 // pred_region
          _
        $region24: #{tpu_custom_call.1} parent=11 // pred_fallthru
          _
      $region12: #{tpu_custom_call.1} parent=5 // pred_fallthru
        _
      %p233 = scmp.lt.s32.totalorder %s21, 2
      // Predicated region
      $region25: #{tpu_custom_call.1} parent=5 // pred_check
        %p234 = pneg %p233
      $region26: #{tpu_custom_call.1} parent=5 // pred_check_branch
        %236 = sbr.rel (%p234) target = $region28
      $region27: #{tpu_custom_call.1} parent=5 // pred_region
        // Predicated region
        $region29: #{tpu_custom_call.1} parent=27 // pred_check
          %p237 = pneg %p62
        $region30: #{tpu_custom_call.1} parent=27 // pred_check_branch
          %239 = sbr.rel (%p237) target = $region32
        $region31: #{tpu_custom_call.1} parent=27 // pred_region
          %s240 = sand.u32 %s52, 1
          %s241 = scalar_lea.sflag [#allocation4], %s240
          %s242 = sand.u32 %s52, 1
          %s243 = smul.addr %s242, 32
          %s244 = scalar_lea.vmem [#allocation3], %s243
          %246 = vsyncadd %s241, 0
          %s247 = smul.addr %s21, 8
          %s248 = smul.addr %s247, 4
          %s249 = scalar_lea.hbm %s1, %s248
          %s250 = sshll.u32 %s249, 4
          %s251 = int_to_ptr.hbm [resolvable:$true] %s250
          %s252 = sshll.u32 %s244, 4
          %s253 = int_to_ptr.vmem [resolvable:$true] %s252
          %258 = dma.hbm_to_vmem [thread:$0]  %s251, 512, %s253, %s241, 64, 64, 4
        $region32: #{tpu_custom_call.1} parent=27 // pred_fallthru
          _
        // Predicated region
        $region33: #{tpu_custom_call.1} parent=27 // pred_check
          %p259 = pneg %p88
        $region34: #{tpu_custom_call.1} parent=27 // pred_check_branch
          %261 = sbr.rel (%p259) target = $region36
        $region35: #{tpu_custom_call.1} parent=27 // pred_region
          %p262 = scmp.lt.s32.totalorder %s21, 1
          %s263 = scalar_select %p262, %s21, 1
          %s264 = scalar_lea.vmem %s2, %s263
        $region36: #{tpu_custom_call.1} parent=27 // pred_fallthru
          _
      $region28: #{tpu_custom_call.1} parent=5 // pred_fallthru
        _
      %p265 = scmp.le.s32.totalorder 1, %s21
      %p266 = scmp.lt.s32.totalorder %s21, 3
      %p267 = pnand %p265, %p266
      %p268 = pneg %p267
      // Predicated region
      $region37: #{tpu_custom_call.1} parent=5 // pred_check
        _
      $region38: #{tpu_custom_call.1} parent=5 // pred_check_branch
        %270 = sbr.rel (%p267) target = $region40
      $region39: #{tpu_custom_call.1} parent=5 // pred_region
        %s271 = ssub.s32 %s21, 1
        %s272 = sand.u32 %s55, 1
        %s273 = scalar_lea.sflag [#allocation4], %s272
        %s274 = sand.u32 %s55, 1
        %s275 = smul.addr %s274, 32
        %s276 = scalar_lea.vmem [#allocation3], %s275
        // Predicated region
        $region41: #{tpu_custom_call.1} parent=39 // pred_check
          %p277 = pneg %p68
        $region42: #{tpu_custom_call.1} parent=39 // pred_check_branch
          %279 = sbr.rel (%p277) target = $region44
        $region43: #{tpu_custom_call.1} parent=39 // pred_region
          %281 = dma.done %s273, 512
        $region44: #{tpu_custom_call.1} parent=39 // pred_fallthru
          _
        %p282 = pneg %p42
        %p283 = pneg %p39
        %s284 = sand.u32 %s55, 1
        %s285 = scalar_lea.sflag [#allocation4], %s284
        %s286 = sand.u32 %s55, 1
        %s287 = smul.addr %s286, 32
        %s288 = scalar_lea.vmem [#allocation3], %s287
        %p289 = pneg %p68
        %p290 = pneg %p65
        %p291 = scmp.lt.s32.totalorder %s26, 1
        %s292 = scalar_select %p291, %s26, 1
        %s293 = scalar_lea.vmem %s2, %s292
        %p294 = pneg %p94
        %p295 = pneg %p91
        %p296 = pneg %p115
        %p297 = pneg %p112
        %p298 = pneg %p136
        %p299 = pneg %p133
        %p300 = pneg %p157
        %p301 = pneg %p154
        %p302 = pneg %p183
        %p303 = pneg %p180
        %s304 = sand.u32 %s26, 1
        %s305 = scalar_lea.sflag [#allocation8], %s304
        %s306 = sand.u32 %s170, 1
        %s307 = smul.addr %s306, 2
        %s308 = scalar_lea.vmem [#allocation7], %s307
        %p309 = pneg %p209
        %p310 = pneg %p206
        %s311 = sand.u32 %s26, 1
        %s312 = scalar_lea.sflag [#allocation8], %s311
        %s313 = sand.u32 %s196, 1
        %s314 = smul.addr %s313, 2
        %s315 = scalar_lea.vmem [#allocation9], %s314
        %p316 = scmp.lt.s32.totalorder %s26, 1
        %s317 = scalar_select %p316, %s26, 1
        %s318 = scalar_lea.vmem %s2, %s317
        %p320 = scmp.eq.s32.totalorder %s26, 0
        %v321 = vld [vmem:[%s0] sm:$0x3]
        %vm322 = vcmask 64512
        %v323 = vsel %vm322, %v321, 0.0
        %v324 = vld [vmem:[#allocation2] sm:$0x3]
        %s325 = scalar_select %p320, 1, 0
        %v326 = vstv %s325
        %vm327 = vcmp.eq.s32.totalorder %v326, 1
        %v328 = vsel %vm327, %v323, %v324
        %v329 = vld [vmem:[%s276] sm:$0xf]
        %v330 = vld [vmem:[%s276 + $0x4] sm:$0xf]
        %v331 = vld [vmem:[%s276 + $0x8] sm:$0xf]
        %v332 = vld [vmem:[%s276 + $0xc] sm:$0xf]
        %v333 = vpack.c.bf16 %v328, %v328
        %v334 = vld [vmem:[%s318] sm:$0x1]
        %v336 = vperm.slane %v334, 0
        %v342 = vunpack.c.l.b16 %v329
        %v343 = vunpack.c.l.b16 %v330
        %v344 = vunpack.c.l.b16 %v331
        %v345 = vunpack.c.l.b16 %v332
        %v346 = vpack.c.b16 %v343, %v342
        %v347 = vpack.c.b16 %v345, %v344
        %vm350 = vcmask 261120
        %v352 = vsel %vm350, %v333, 0
        %354 = vmatpush.bf16.msra.mxu0 0
        %355 = vmatpush.bf16.msra.mxu0 0
        %356 = vmatpush.bf16.msra.mxu0 0
        %357 = vmatpush.bf16.msra.mxu0 0
        %358 = vmatpush.bf16.msra.mxu0 0
        %359 = vmatpush.bf16.msra.mxu0 0
        %360 = vmatpush.bf16.msra.mxu0 %v347
        %361 = vmatpush.bf16.msra.mxu0 %v346
        %362 = vmatmul.bf16.gmra.mxu0 %v352
        %v363 = vpop.f32.mrf.mxu0
        %v364 = vadd.f32 %v336, %v363
        %v365 = vpop.f32.mrf.mxu0
        %366 = vdwg.mxu0
        %v367 = vxor.u32 %v364, 2147483648
        %v368 = vmul.f32 %v367, 1.442695
        %v369 = vpow.pop %v368
        %v370 = vadd.f32 %v369, 1.0
        %v371 = vrcp.pop %v370
        %v372 = vmul.f32 %v370, %v371
        %v373 = vsub.f32 1.0, %v372
        %v374 = vmul.f32 %v371, %v373
        %v375 = vadd.f32 %v371, %v374
        %vm376 = vweird.f32 %v370
        %vm377 = vweird.f32 %v371
        %vm378 = vmor %vm376, %vm377
        %v379 = vsel %vm378, %v371, %v375
        %v380 = vand.u32 2147483647, %v370
        %vm381 = vcmp.eq.f32.partialorder %v380, 8.507059e+37
        %v382 = vand.u32 %v370, 2147483648
        %v383 = vor.u32 1.1754944e-38, %v382
        %v384 = vsel %vm381, %v383, %v379
        %v385 = vmul.f32 1.0, %v384
        %v386 = vtanh.pop %v364
        %388 = vrot.lane.b32.xlu0 %v386, 64
        %v389 = vpop.permute.xlu0 %388
        %v391 = vmul.f32 %v385, %v389
        %v392 = vtanh.pop %v391
        %394 = vrot.lane.b32.xlu0 %v392, 96
        %v395 = vpop.permute.xlu0 %394
        %v397 = vmul.f32 %v385, %v395
        %399 = vrot.lane.b32.xlu0 %v397, 32
        %v400 = vpop.permute.xlu0 %399
        %vm402 = vcmask 254976
        %403 = vst.msk [vmem:[%s308] sm:$0x3] %vm402, %v400
        %404 = vst.msk [vmem:[%s315] sm:$0x3] %vm402, %v391
        %405 = vst.msk [vmem:[#allocation2] sm:$0x3] %vm402, %v400
        %p406 = scmp.eq.s32.totalorder %s26, 1
        // Predicated region
        $region45: #{tpu_custom_call.1} parent=39 // pred_check
          %p407 = pneg %p406
        $region46: #{tpu_custom_call.1} parent=39 // pred_check_branch
          %409 = sbr.rel (%p407) target = $region48
        $region47: #{tpu_custom_call.1} parent=39 // pred_region
          %v410 = vpack.c.bf16 %v397, %v397
          %v411 = vld [vmem:[%s3] sm:$0xf]
          %v412 = vld [vmem:[%s3 + $0x4] sm:$0xf]
          %v413 = vld [vmem:[%s3 + $0x8] sm:$0xf]
          %v414 = vld [vmem:[%s3 + $0xc] sm:$0xf]
          %v415 = vld [vmem:[%s4] sm:$0x1]
          %v417 = vperm.slane %v415, 0
          %420 = vrot.lane.b32.xlu0 %v410, 32
          %v421 = vpop.permute.xlu0 %420
          %v426 = vunpack.c.l.b16 %v411
          %v427 = vunpack.c.l.b16 %v412
          %v428 = vunpack.c.l.b16 %v413
          %v429 = vunpack.c.l.b16 %v414
          %v430 = vpack.c.b16 %v427, %v426
          %v431 = vpack.c.b16 %v429, %v428
          %v435 = vsel %vm350, %v421, 0
          %437 = vmatpush.bf16.msra.mxu0 0
          %438 = vmatpush.bf16.msra.mxu0 0
          %439 = vmatpush.bf16.msra.mxu0 0
          %440 = vmatpush.bf16.msra.mxu0 0
          %441 = vmatpush.bf16.msra.mxu0 0
          %442 = vmatpush.bf16.msra.mxu0 0
          %443 = vmatpush.bf16.msra.mxu0 %v431
          %444 = vmatpush.bf16.msra.mxu0 %v430
          %445 = vmatmul.bf16.gmra.mxu0 %v435
          %v446 = vpop.f32.mrf.mxu0
          %v447 = vadd.f32 %v417, %v446
          %v448 = vpop.f32.mrf.mxu0
          %449 = vdwg.mxu0
          %vm450 = vcmask 58368
          %451 = vst.msk [vmem:[#allocation6] sm:$0x3] %vm450, %v447
        $region48: #{tpu_custom_call.1} parent=39 // pred_fallthru
          _
        %s452 = sand.u32 %s26, 1
        %s453 = scalar_lea.sflag [#allocation8], %s452
        %s454 = sand.u32 %s170, 1
        %s455 = smul.addr %s454, 2
        %s456 = scalar_lea.vmem [#allocation7], %s455
        %s457 = sand.u32 %s26, 1
        %s458 = scalar_lea.sflag [#allocation8], %s457
        %s459 = sand.u32 %s196, 1
        %s460 = smul.addr %s459, 2
        %s461 = scalar_lea.vmem [#allocation9], %s460
        // Predicated region
        $region49: #{tpu_custom_call.1} parent=39 // pred_check
          %p462 = pneg %p154
        $region50: #{tpu_custom_call.1} parent=39 // pred_check_branch
          %464 = sbr.rel (%p462) target = $region52
        $region51: #{tpu_custom_call.1} parent=39 // pred_region
          %466 = vsyncadd [#allocation5], 0
          %s468 = sshll.u32 [#allocation6], 4
          %s469 = int_to_ptr.vmem [resolvable:$true] %s468
          %s470 = sshll.u32 %s5, 4
          %s471 = int_to_ptr.hbm [resolvable:$true] %s470
          %473 = dma.vmem_to_hbm [thread:$0]  %s469, 32, %s471, [#allocation5]
        $region52: #{tpu_custom_call.1} parent=39 // pred_fallthru
          _
        // Predicated region
        $region53: #{tpu_custom_call.1} parent=39 // pred_check
          %p474 = pneg %p180
        $region54: #{tpu_custom_call.1} parent=39 // pred_check_branch
          %476 = sbr.rel (%p474) target = $region56
        $region55: #{tpu_custom_call.1} parent=39 // pred_region
          %478 = vsyncadd %s453, 0
          %s479 = smul.addr %s26, 2
          %s480 = scalar_lea.hbm %s6, %s479
          %s482 = sshll.u32 %s456, 4
          %s483 = int_to_ptr.vmem [resolvable:$true] %s482
          %s484 = sshll.u32 %s480, 4
          %s485 = int_to_ptr.hbm [resolvable:$true] %s484
          %487 = dma.vmem_to_hbm [thread:$0]  %s483, 32, %s485, %s453
        $region56: #{tpu_custom_call.1} parent=39 // pred_fallthru
          _
        // Predicated region
        $region57: #{tpu_custom_call.1} parent=39 // pred_check
          %p488 = pneg %p206
        $region58: #{tpu_custom_call.1} parent=39 // pred_check_branch
          %490 = sbr.rel (%p488) target = $region60
        $region59: #{tpu_custom_call.1} parent=39 // pred_region
          %492 = vsyncadd %s458, 0
          %s493 = smul.addr %s26, 2
          %s494 = scalar_lea.hbm %s7, %s493
          %s496 = sshll.u32 %s461, 4
          %s497 = int_to_ptr.vmem [resolvable:$true] %s496
          %s498 = sshll.u32 %s494, 4
          %s499 = int_to_ptr.hbm [resolvable:$true] %s498
          %501 = dma.vmem_to_hbm [thread:$0]  %s497, 32, %s499, %s458
        $region60: #{tpu_custom_call.1} parent=39 // pred_fallthru
          _
        // Predicated region
        $region61: #{tpu_custom_call.1} parent=39 // pred_check
          %p502 = pneg %p154
        $region62: #{tpu_custom_call.1} parent=39 // pred_check_branch
          %504 = sbr.rel (%p502) target = $region64
        $region63: #{tpu_custom_call.1} parent=39 // pred_region
          %506 = dma.done [#allocation5], 32
        $region64: #{tpu_custom_call.1} parent=39 // pred_fallthru
          _
      $region40: #{tpu_custom_call.1} parent=5 // pred_fallthru
        _
      %p507 = scmp.le.s32.totalorder 2, %s21
      // Predicated region
      $region65: #{tpu_custom_call.1} parent=5 // pred_check
        %p508 = pneg %p507
      $region66: #{tpu_custom_call.1} parent=5 // pred_check_branch
        %510 = sbr.rel (%p508) target = $region68
      $region67: #{tpu_custom_call.1} parent=5 // pred_region
        %s511 = ssub.s32 %s21, 2
        // Predicated region
        $region69: #{tpu_custom_call.1} parent=67 // pred_check
          %p512 = pneg %p186
        $region70: #{tpu_custom_call.1} parent=67 // pred_check_branch
          %514 = sbr.rel (%p512) target = $region72
        $region71: #{tpu_custom_call.1} parent=67 // pred_region
          %s515 = sand.u32 %s27, 1
          %s516 = scalar_lea.sflag [#allocation8], %s515
          %s517 = sand.u32 %s171, 1
          %s518 = smul.addr %s517, 2
          %s519 = scalar_lea.vmem [#allocation7], %s518
          %521 = dma.done %s516, 32
        $region72: #{tpu_custom_call.1} parent=67 // pred_fallthru
          _
        // Predicated region
        $region73: #{tpu_custom_call.1} parent=67 // pred_check
          %p522 = pneg %p212
        $region74: #{tpu_custom_call.1} parent=67 // pred_check_branch
          %524 = sbr.rel (%p522) target = $region76
        $region75: #{tpu_custom_call.1} parent=67 // pred_region
          %s525 = sand.u32 %s27, 1
          %s526 = scalar_lea.sflag [#allocation8], %s525
          %s527 = sand.u32 %s197, 1
          %s528 = smul.addr %s527, 2
          %s529 = scalar_lea.vmem [#allocation9], %s528
          %531 = dma.done %s526, 32
        $region76: #{tpu_custom_call.1} parent=67 // pred_fallthru
          _
      $region68: #{tpu_custom_call.1} parent=5 // pred_fallthru
        _
    $region6: #{tpu_custom_call.1} parent=1 // loop_footer
      %s25 = sadd.s32 1, %s21
    $region7: #{tpu_custom_call.1} parent=1 // loop_footer_branch
      %20 = sbr.rel target = $region3
    $region8: #{tpu_custom_call.1} parent=1 // loop_exit
      _
    %532 = vsyncpa [#allocation4], 1
    %s533 = scalar_lea.sflag [#allocation4], 1
    %534 = vsyncpa %s533, 1
    %535 = vsyncpa [#allocation5], 1
    %s536 = scalar_lea.sflag [#allocation5], 1
    %537 = vsyncpa %s536, 1
    %538 = vsyncpa [#allocation8], 1
    %s539 = scalar_lea.sflag [#allocation8], 1
    %540 = vsyncpa %s539, 1

</llo_original>
